<compile_context>
chip_gen: v5e
topology: v5e:2x2
jax: 0.10.0
libtpu: 0.0.40
codegen_flags: <defaults>
</compile_context>

<pallas_src>
import functools
import math

import jax
import jax.numpy as jnp
from jax import lax
from jax.experimental import pallas as pl
from jax.experimental.pallas import tpu as pltpu


_NEG_INF = -1e30  # large finite negative: masked scores -> exp underflows to 0


def _round_up(x, m):
    return ((x + m - 1) // m) * m


def _cdiv(a, b):
    return -(-a // b)


# ----------------------------- Pallas kernel --------------------------------

def _sparse_attn_body(qidx_ref, q_ref, kT_ref, v_ref, o_ref, s_ref,
                      m_sc, l_sc, acc_sc, *, mask_flag, L_K, tk, has_pad):
    """One (batch, head-group, key-tile) grid step of top-u query attention.

    Block views (leading batch dim of size 1):
      qidx_ref: [1, h, u, 1] int32  original positions of the selected queries
      q_ref   : [1, h, u, D]        selected (reduced) queries, pre-scaled
      kT_ref  : [1, h, D, tk]       lane-dense key tile (K transposed)
      v_ref   : [1, h, tk, D]       value tile
      o_ref   : [1, h, u, D]        attention output (written at last kv tile)
      s_ref   : [1, h, u, tk] bf16 or None  raw masked scores (if requested)
    Scratch (persists across the kv axis): online-softmax running state.
    """
    kv = pl.program_id(2)

    @pl.when(kv == 0)
    def _init():
        m_sc[...] = jnp.full_like(m_sc, _NEG_INF)
        l_sc[...] = jnp.zeros_like(l_sc)
        acc_sc[...] = jnp.zeros_like(acc_sc)

    q = q_ref[0]                       # [h, u, D]  (already multiplied by scale)
    kT = kT_ref[0]                     # [h, D, tk]
    v = v_ref[0]                       # [h, tk, D]

    # Native MXU form per head: [u, D] x [D, tk].
    s = jnp.einsum("hud,hdk->huk", q, kT,
                   preferred_element_type=jnp.float32)          # [h, u, tk]

    # Small (1,1,tk) iota; big [h,u,tk] tensors appear only in the select.
    if mask_flag or has_pad:
        col = kv * tk + lax.broadcasted_iota(jnp.int32, (1, 1, tk), 2)
    if mask_flag:
        keep = col <= qidx_ref[0]          # [1,1,tk] vs [h,u,1] -> [h,u,tk]
        if has_pad:
            keep = jnp.logical_and(keep, col < L_K)
        s = jnp.where(keep, s, _NEG_INF)
    elif has_pad:
        s = jnp.where(col < L_K, s, _NEG_INF)

    if s_ref is not None:
        s_ref[0] = s.astype(s_ref.dtype)

    # Online softmax accumulation over key tiles.
    m_prev = m_sc[...]
    m_new = jnp.maximum(m_prev, jnp.max(s, axis=-1, keepdims=True))
    alpha = jnp.exp(m_prev - m_new)
    p = jnp.exp(s - m_new)
    l_sc[...] = alpha * l_sc[...] + jnp.sum(p, axis=-1, keepdims=True)
    acc_sc[...] = alpha * acc_sc[...] + jnp.einsum(
        "huk,hkd->hud", p.astype(v.dtype), v,
        preferred_element_type=jnp.float32)
    m_sc[...] = m_new

    @pl.when(kv == pl.num_programs(2) - 1)
    def _finalize():
        # approx=True: EUP reciprocal, ~2^-12 relative error in normalization.
        inv_l = pl.reciprocal(l_sc[...], approx=True)
        o_ref[0] = (acc_sc[...] * inv_l).astype(o_ref.dtype)


# --------------------------- tiling / VMEM sizing ----------------------------

def _vmem_capacity_bytes():
    try:
        info = pltpu.get_tpu_info()
        cap = getattr(info, "vmem_capacity_bytes", None)
        if cap:
            return int(cap)
    except Exception:
        pass
    return 64 * 1024 * 1024  # conservative floor (v7x per-core VMEM)


def _estimate_vmem_bytes(h_per, tk, u_pad, D, q_bytes, kv_bytes, out_bytes,
                         emit_scores):
    """Conservative VMEM estimate incl. 2x pipelining buffers + lane padding."""
    def tile(d0, rows, cols, itemsize, sub):
        return d0 * _round_up(rows, sub) * _round_up(cols, 128) * itemsize

    sub_q = 8 if q_bytes >= 4 else 16
    sub_kv = 8 if kv_bytes >= 4 else 16
    sub_o = 8 if out_bytes >= 4 else 16
    db = 2  # BlockSpec double buffering
    total = 0
    total += db * tile(h_per, u_pad, 1, 4, 8)                    # q indices
    total += db * tile(h_per, u_pad, D, q_bytes, sub_q)          # q
    total += db * tile(h_per, D, tk, kv_bytes, sub_kv)           # k (transposed)
    total += db * tile(h_per, tk, D, kv_bytes, sub_kv)           # v
    total += db * tile(h_per, u_pad, D, out_bytes, sub_o)        # output
    if emit_scores:
        total += db * tile(h_per, u_pad, tk, 2, 16)              # bf16 scores
    total += 2 * tile(h_per, u_pad, 1, 4, 8)                     # m, l scratch
    total += tile(h_per, u_pad, D, 4, 8)                         # acc scratch
    return total


def _select_config(B, H, L_K, u_pad, D, q_bytes, kv_bytes, out_bytes,
                   emit_scores):
    """Pick (tk, n_head_groups) per chip so double-buffered tiles fit VMEM."""
    vmem_cap = _vmem_capacity_bytes()
    budget = int(vmem_cap * 0.6)   # leave headroom for compiler scratch

    # Key-tile candidates (largest first).  Short key axes use one full tile
    # (full-dim blocks need no 128 alignment); otherwise pick the tile that
    # minimizes tail padding under each cap.
    if L_K <= 1024:
        tk_candidates = [L_K]
    else:
        tk_candidates = []
        for cap in (1024, 512, 256, 128):
            n = _cdiv(L_K, cap)
            tk = _round_up(_cdiv(L_K, n), 128)
            if tk not in tk_candidates:
                tk_candidates.append(tk)

    divisors = [d for d in range(1, H + 1) if H % d == 0]
    # v7x has 2 TensorCores: keep >= 2 independent parallel work items.
    min_groups = 1 if B >= 2 else min([d for d in divisors if d >= 2], default=1)
    divisors = [d for d in divisors if d >= min_groups]

    for tk in tk_candidates:
        for groups in divisors:
            est = _estimate_vmem_bytes(H // groups, tk, u_pad, D,
                                       q_bytes, kv_bytes, out_bytes, emit_scores)
            if est <= budget:
                return tk, groups, vmem_cap, est
    tk = tk_candidates[-1]
    groups = divisors[-1]
    est = _estimate_vmem_bytes(H // groups, tk, u_pad, D,
                               q_bytes, kv_bytes, out_bytes, emit_scores)
    return tk, groups, vmem_cap, est


# ----------------------------- Pallas call wrapper ---------------------------

def _sparse_attn_core(q_red, kT, v, q_idx, *, mask_flag, emit_scores):
    """ProbSparse compute core: attention of the u selected queries vs all keys.

    q_red: [B,H,u_pad,D] (pre-scaled)   kT: [B,H,D,L_K]   v: [B,H,L_K,D]
    q_idx: [B,H,u_pad,1] int32 (original query positions, for the prob mask).
    Returns ctx_update [B,H,u_pad,D] (+ bf16 raw scores [B,H,u_pad,L_Kp] when
    emit_scores=True).
    """
    B, H, u_pad, D = q_red.shape
    L_K = kT.shape[-1]

    tk, groups, vmem_cap, est = _select_config(
        B, H, L_K, u_pad, D, q_red.dtype.itemsize, kT.dtype.itemsize,
        q_red.dtype.itemsize, emit_scores)
    h_per = H // groups

    n_kv = _cdiv(L_K, tk)
    L_Kp = n_kv * tk
    has_pad = (L_Kp != L_K)
    if has_pad:
        kT = jnp.pad(kT, ((0, 0), (0, 0), (0, 0), (0, L_Kp - L_K)))
        v = jnp.pad(v, ((0, 0), (0, 0), (0, L_Kp - L_K), (0, 0)))

    body = functools.partial(_sparse_attn_body, mask_flag=mask_flag,
                             L_K=L_K, tk=tk, has_pad=has_pad)
    if emit_scores:
        def kernel(qidx_ref, q_ref, k_ref, v_ref, o_ref, s_ref, m, l, a):
            body(qidx_ref, q_ref, k_ref, v_ref, o_ref, s_ref, m, l, a)
    else:
        def kernel(qidx_ref, q_ref, k_ref, v_ref, o_ref, m, l, a):
            body(qidx_ref, q_ref, k_ref, v_ref, o_ref, None, m, l, a)

    qidx_spec = pl.BlockSpec((1, h_per, u_pad, 1), lambda b, g, kv: (b, g, 0, 0))
    q_spec = pl.BlockSpec((1, h_per, u_pad, D), lambda b, g, kv: (b, g, 0, 0))
    k_spec = pl.BlockSpec((1, h_per, D, tk), lambda b, g, kv: (b, g, 0, kv))
    v_spec = pl.BlockSpec((1, h_per, tk, D), lambda b, g, kv: (b, g, kv, 0))
    o_spec = pl.BlockSpec((1, h_per, u_pad, D), lambda b, g, kv: (b, g, 0, 0))

    out_shape = [jax.ShapeDtypeStruct((B, H, u_pad, D), q_red.dtype)]
    out_specs = [o_spec]
    if emit_scores:
        out_shape.append(jax.ShapeDtypeStruct((B, H, u_pad, L_Kp), jnp.bfloat16))
        out_specs.append(
            pl.BlockSpec((1, h_per, u_pad, tk), lambda b, g, kv: (b, g, 0, kv)))

    vmem_limit = int(min(max(2 * est, 32 * 1024 * 1024), int(0.9 * vmem_cap)))

    return pl.pallas_call(
        kernel,
        out_shape=tuple(out_shape) if emit_scores else out_shape[0],
        grid_spec=pltpu.PrefetchScalarGridSpec(
            num_scalar_prefetch=0,
            grid=(B, groups, n_kv),
            in_specs=[qidx_spec, q_spec, k_spec, v_spec],
            out_specs=tuple(out_specs) if emit_scores else out_specs[0],
            scratch_shapes=[
                pltpu.VMEM((h_per, u_pad, 1), jnp.float32),   # running max
                pltpu.VMEM((h_per, u_pad, 1), jnp.float32),   # running denom
                pltpu.VMEM((h_per, u_pad, D), jnp.float32),   # output accumulator
            ]),
        compiler_params=pltpu.CompilerParams(
            dimension_semantics=("parallel", "parallel", "arbitrary"),
            vmem_limit_bytes=vmem_limit),
    )(q_idx, q_red, kT, v)


# ------------------------------ Module wrapper -------------------------------

def prob_sparse_attention(queries, keys, values, attention_mask=None, *,
                          sample_rng, mask_flag=True, factor=5, scale=None,
                          output_attention=False, kv_compute_dtype=None):
    """JAX/Pallas equivalent of ProbSparseAttention.forward.

    queries: [B, L_Q, H, D], keys/values: [B, L_K, H, D] (L_K == L_V).
    `attention_mask` is accepted for signature parity but (exactly as in the
    reference module) ignored; when mask_flag=True the prob mask is built
    internally.  Dropout is defined but never applied in the reference
    forward, so it is omitted.  Returns (context [B, L_Q, H, D], attention),
    where attention is the full [B, H, L_V, L_V] matrix if
    output_attention=True and None otherwise.  `kv_compute_dtype=jnp.bfloat16`
    optionally halves the K/V stream (accumulation stays f32).
    """
    del attention_mask  # ignored by the reference forward as well
    B, L_Q, H, D = queries.shape
    L_K = keys.shape[1]
    L_V = values.shape[1]

    q = jnp.transpose(queries, (0, 2, 1, 3))    # [B, H, L_Q, D]
    k = jnp.transpose(keys, (0, 2, 1, 3))       # [B, H, L_K, D] (sampling glue)
    v = jnp.transpose(values, (0, 2, 1, 3))     # [B, H, L_V, D]
    kT = jnp.transpose(keys, (0, 2, 3, 1))      # [B, H, D, L_K] lane-dense kernel K

    U_part = min(int(factor * math.ceil(math.log(L_K))), L_K)
    u = min(int(factor * math.ceil(math.log(L_Q))), L_Q)

    # ---- _prob_QK: random key sampling, sparsity measure, top-u queries ----
    # TODO(synk): the per-query random key gather (+ top_k / take_along_axis)
    # stays in XLA; a per-row data-dependent gather has no rectangular
    # BlockSpec expression, and an in-kernel dynamic gather is not portable.
    index_sample = jax.random.randint(sample_rng, (L_Q, U_part), 0, L_K)
    K_sample = k[:, :, index_sample, :]                        # [B,H,L_Q,U_part,D]
    Q_K_sample = jnp.einsum("bhqd,bhqsd->bhqs", q, K_sample)   # [B,H,L_Q,U_part]
    M = jnp.max(Q_K_sample, axis=-1) - jnp.sum(Q_K_sample, axis=-1) / L_K
    M_top = lax.top_k(M, u)[1].astype(jnp.int32)               # [B,H,u]
    Q_reduce = jnp.take_along_axis(q, M_top[..., None], axis=2)  # [B,H,u,D]

    # Fold the score scale into the tiny reduced-query tensor (one pass over
    # [B,H,u,D]) instead of scaling [H,u,tk] scores on every key tile.
    sc = float(scale) if scale else 1.0 / math.sqrt(D)
    Q_reduce = Q_reduce * jnp.asarray(sc, Q_reduce.dtype)

    # Sublane-align u (16 covers both f32 and bf16 packing).  Pad rows use
    # query index 0 so they are never fully masked (keeps l > 0).
    u_pad = _round_up(u, 16)
    if u_pad != u:
        Q_reduce = jnp.pad(Q_reduce, ((0, 0), (0, 0), (0, u_pad - u), (0, 0)))
        M_top_p = jnp.pad(M_top, ((0, 0), (0, 0), (0, u_pad - u)))
    else:
        M_top_p = M_top
    q_idx = M_top_p[..., None]                                  # [B,H,u_pad,1]

    if kv_compute_dtype is not None:
        kT = kT.astype(kv_compute_dtype)
        v_in = v.astype(kv_compute_dtype)
        Q_reduce = Q_reduce.astype(kv_compute_dtype)
    else:
        v_in = v

    # ---- Pallas core: scores over all keys, prob mask, softmax, attn @ V ----
    core = _sparse_attn_core(Q_reduce, kT, v_in, q_idx,
                             mask_flag=mask_flag, emit_scores=output_attention)
    if output_attention:
        ctx_update, raw_scores = core
    else:
        ctx_update, raw_scores = core, None
    ctx_update = ctx_update[:, :, :u, :].astype(q.dtype)

    # ---- _get_initial_context ----
    if mask_flag:
        assert L_Q == L_V, "mask_flag=True requires L_Q == L_V (as in torch)"
        # TODO(synk): sequence cumsum stays in XLA (memory-bound glue).
        context = jnp.cumsum(v, axis=2)                        # [B,H,L_V,D]
    else:
        v_mean = jnp.mean(v, axis=2, keepdims=True)            # [B,H,1,D]
        context = jnp.broadcast_to(v_mean, (B, H, L_Q, D))

    # ---- _update_context: scatter the selected-query rows (XLA scatter) ----
    b_idx = jnp.arange(B)[:, None, None]
    h_idx = jnp.arange(H)[None, :, None]
    context = context.at[b_idx, h_idx, M_top].set(ctx_update.astype(context.dtype))
    out = jnp.transpose(context, (0, 2, 1, 3))                 # [B, L_Q, H, D]

    if output_attention:
        scores = raw_scores[:, :, :u, :L_K].astype(jnp.float32)
        attn = jax.nn.softmax(scores, axis=-1)                 # [B,H,u,L_K]
        attentions = jnp.full((B, H, L_V, L_V), 1.0 / L_V, dtype=attn.dtype)
        attentions = attentions.at[b_idx, h_idx, M_top].set(attn)
        return out, attentions
    return out, None


# ----------------------- pure-JAX reference (for checking) -------------------

def _reference_forward(queries, keys, values, sample_rng, mask_flag=True,
                       factor=5, scale=None, output_attention=False):
    B, L_Q, H, D = queries.shape
    L_K = keys.shape[1]
    L_V = values.shape[1]
    q = jnp.transpose(queries, (0, 2, 1, 3))
    k = jnp.transpose(keys, (0, 2, 1, 3))
    v = jnp.transpose(values, (0, 2, 1, 3))
    U_part = min(int(factor * math.ceil(math.log(L_K))), L_K)
    u = min(int(factor * math.ceil(math.log(L_Q))), L_Q)
    index_sample = jax.random.randint(sample_rng, (L_Q, U_part), 0, L_K)
    K_sample = k[:, :, index_sample, :]
    Q_K_sample = jnp.einsum("bhqd,bhqsd->bhqs", q, K_sample)
    M = jnp.max(Q_K_sample, -1) - jnp.sum(Q_K_sample, -1) / L_K
    M_top = lax.top_k(M, u)[1].astype(jnp.int32)
    Q_reduce = jnp.take_along_axis(q, M_top[..., None], axis=2)
    sc = float(scale) if scale else 1.0 / math.sqrt(D)
    scores = jnp.einsum("bhud,bhkd->bhuk", Q_reduce, k) * sc
    if mask_flag:
        col = jnp.arange(L_K)[None, None, None, :]
        scores = jnp.where(col <= M_top[..., None], scores, -jnp.inf)
        context = jnp.cumsum(v, axis=2)
    else:
        context = jnp.broadcast_to(jnp.mean(v, axis=2, keepdims=True),
                                   (B, H, L_Q, D))
    attn = jax.nn.softmax(scores, axis=-1)
    upd = jnp.einsum("bhuk,bhkd->bhud", attn, v)
    b_idx = jnp.arange(B)[:, None, None]
    h_idx = jnp.arange(H)[None, :, None]
    context = context.at[b_idx, h_idx, M_top].set(upd)
    out = jnp.transpose(context, (0, 2, 1, 3))
    if output_attention:
        attentions = jnp.full((B, H, L_V, L_V), 1.0 / L_V, dtype=attn.dtype)
        attentions = attentions.at[b_idx, h_idx, M_top].set(attn)
        return out, attentions
    return out, None


# ----------------------------------- main ------------------------------------

if __name__ == "__main__":
    key = jax.random.PRNGKey(0)
    kq, kk, kv_, ks = jax.random.split(key, 4)

    # Small shapes: u = U_part = 5 * ceil(ln 16) = 15 < 16 -> real sparse path.
    B, L, H, D = 2, 16, 4, 32
    queries = jax.random.normal(kq, (B, L, H, D), jnp.float32)
    keys = jax.random.normal(kk, (B, L, H, D), jnp.float32)
    values = jax.random.normal(kv_, (B, L, H, D), jnp.float32)

    # Default Informer config: mask_flag=True, factor=5, output_attention=False.
    ctx, attn = prob_sparse_attention(queries, keys, values, None,
                                      sample_rng=ks, mask_flag=True,
                                      factor=5, output_attention=False)
    jax.block_until_ready(ctx)
    ctx_ref, _ = _reference_forward(queries, keys, values, ks, mask_flag=True,
                                    factor=5, output_attention=False)
    assert ctx.shape == (B, L, H, D)
    assert attn is None
    assert bool(jnp.all(jnp.isfinite(ctx)))
    assert bool(jnp.allclose(ctx, ctx_ref, atol=5e-3, rtol=5e-3))

    # Also exercise the unmasked + output_attention branch.
    ctx2, attn2 = prob_sparse_attention(queries, keys, values, None,
                                        sample_rng=ks, mask_flag=False,
                                        factor=5, output_attention=True)
    jax.block_until_ready((ctx2, attn2))
    ctx2_ref, attn2_ref = _reference_forward(queries, keys, values, ks,
                                             mask_flag=False, factor=5,
                                             output_attention=True)
    assert ctx2.shape == (B, L, H, D)
    assert attn2.shape == (B, H, L, L)
    assert bool(jnp.all(jnp.isfinite(ctx2))) and bool(jnp.all(jnp.isfinite(attn2)))
    assert bool(jnp.allclose(ctx2, ctx2_ref, atol=5e-3, rtol=5e-3))
    assert bool(jnp.allclose(attn2, attn2_ref, atol=5e-2, rtol=5e-2))

    print("KERNEL_OK")
</pallas_src>

<mosaic_0001>
module attributes {stable_mosaic.version = 11 : i64} {
  func.func @kernel(%arg0: i32, %arg1: i32, %arg2: i32, %arg3: memref<1x4x16x1xi32, #tpu.memory_space<vmem>>, %arg4: memref<1x4x16x32xf32, #tpu.memory_space<vmem>>, %arg5: memref<1x4x32x16xf32, #tpu.memory_space<vmem>>, %arg6: memref<1x4x16x32xf32, #tpu.memory_space<vmem>>, %arg7: memref<1x4x16x32xf32, #tpu.memory_space<vmem>>, %arg8: memref<4x16x1xf32, #tpu.memory_space<vmem>>, %arg9: memref<4x16x1xf32, #tpu.memory_space<vmem>>, %arg10: memref<4x16x32xf32, #tpu.memory_space<vmem>>) attributes {dimension_semantics = [#tpu.dimension_semantics<parallel>, #tpu.dimension_semantics<parallel>, #tpu.dimension_semantics<arbitrary>], iteration_bounds = array<i64: 2, 1, 1>, scalar_prefetch = 0 : i64, scratch_operands = 3 : i64, tpu.core_type = #tpu.core_type<tc>, window_params = [{transform_indices = @transform_0, window_bounds = array<i64: 1, 4, 16, 1>}, {transform_indices = @transform_1, window_bounds = array<i64: 1, 4, 16, 32>}, {transform_indices = @transform_2, window_bounds = array<i64: 1, 4, 32, 16>}, {transform_indices = @transform_3, window_bounds = array<i64: 1, 4, 16, 32>}, {transform_indices = @transform_4, window_bounds = array<i64: 1, 4, 16, 32>}]} {
    %c0_i32 = arith.constant 0 : i32
    %0 = arith.cmpi eq, %arg2, %c0_i32 : i32
    %1 = arith.extui %0 : i1 to i32
    %c0_i32_0 = arith.constant 0 : i32
    %2 = arith.cmpi ne, %1, %c0_i32_0 : i32
    scf.if %2 {
      %cst_40 = arith.constant -1.000000e+30 : f32
      %46 = vector.broadcast %cst_40 : f32 to vector<4x16x1xf32>
      %c0_41 = arith.constant 0 : index
      %c0_42 = arith.constant 0 : index
      %c0_43 = arith.constant 0 : index
      %47 = vector.load %arg8[%c0_41, %c0_42, %c0_43] : memref<4x16x1xf32, #tpu.memory_space<vmem>>, vector<4x16x1xf32>
      tpu.vector_store %arg8[%c0_41, %c0_42, %c0_43], %46 {strides = array<i32>} : memref<4x16x1xf32, #tpu.memory_space<vmem>>, vector<4x16x1xf32>,
      %cst_44 = arith.constant 0.000000e+00 : f32
      %48 = vector.broadcast %cst_44 : f32 to vector<4x16x1xf32>
      %c0_45 = arith.constant 0 : index
      %c0_46 = arith.constant 0 : index
      %c0_47 = arith.constant 0 : index
      %49 = vector.load %arg9[%c0_45, %c0_46, %c0_47] : memref<4x16x1xf32, #tpu.memory_space<vmem>>, vector<4x16x1xf32>
      tpu.vector_store %arg9[%c0_45, %c0_46, %c0_47], %48 {strides = array<i32>} : memref<4x16x1xf32, #tpu.memory_space<vmem>>, vector<4x16x1xf32>,
      %cst_48 = arith.constant 0.000000e+00 : f32
      %50 = vector.broadcast %cst_48 : f32 to vector<4x16x32xf32>
      %c0_49 = arith.constant 0 : index
      %c0_50 = arith.constant 0 : index
      %c0_51 = arith.constant 0 : index
      %51 = vector.load %arg10[%c0_49, %c0_50, %c0_51] : memref<4x16x32xf32, #tpu.memory_space<vmem>>, vector<4x16x32xf32>
      tpu.vector_store %arg10[%c0_49, %c0_50, %c0_51], %50 {strides = array<i32>} : memref<4x16x32xf32, #tpu.memory_space<vmem>>, vector<4x16x32xf32>,
    } else {
    }
    %c0 = arith.constant 0 : index
    %c0_1 = arith.constant 0 : index
    %c0_2 = arith.constant 0 : index
    %c0_3 = arith.constant 0 : index
    %3 = vector.load %arg4[%c0, %c0_1, %c0_2, %c0_3] : memref<1x4x16x32xf32, #tpu.memory_space<vmem>>, vector<1x4x16x32xf32>
    %4 = vector.shape_cast %3 : vector<1x4x16x32xf32> to vector<4x16x32xf32>
    %c0_4 = arith.constant 0 : index
    %c0_5 = arith.constant 0 : index
    %c0_6 = arith.constant 0 : index
    %c0_7 = arith.constant 0 : index
    %5 = vector.load %arg5[%c0_4, %c0_5, %c0_6, %c0_7] : memref<1x4x32x16xf32, #tpu.memory_space<vmem>>, vector<1x4x32x16xf32>
    %6 = vector.shape_cast %5 : vector<1x4x32x16xf32> to vector<4x32x16xf32>
    %c0_8 = arith.constant 0 : index
    %c0_9 = arith.constant 0 : index
    %c0_10 = arith.constant 0 : index
    %c0_11 = arith.constant 0 : index
    %7 = vector.load %arg6[%c0_8, %c0_9, %c0_10, %c0_11] : memref<1x4x16x32xf32, #tpu.memory_space<vmem>>, vector<1x4x16x32xf32>
    %8 = vector.shape_cast %7 : vector<1x4x16x32xf32> to vector<4x16x32xf32>
    "tpu.trace_start"() <{level = 10 : i32, message = "hud,hdk->huk"}> : () -> ()
    %cst = arith.constant dense<0.000000e+00> : vector<4x16x16xf32>
    %9 = tpu.matmul %4, %6, %cst {dimension_numbers = #tpu.dot_dimension_numbers<[2], [1], [1], [2], [0, 0, 0, 1, 1, 2], [0], [0]>} : vector<4x16x32xf32>, vector<4x32x16xf32>, vector<4x16x16xf32> -> vector<4x16x16xf32>
    "tpu.trace_stop"() : () -> ()
    %c16_i32 = arith.constant 16 : i32
    %10 = arith.muli %arg2, %c16_i32 : i32
    %11 = tpu.iota {dimensions = array<i32: 2>} : vector<1x1x16xi32>
    %12 = vector.broadcast %10 : i32 to vector<1x1x16xi32>
    %13 = arith.addi %12, %11 : vector<1x1x16xi32>
    %c0_12 = arith.constant 0 : index
    %c0_13 = arith.constant 0 : index
    %c0_14 = arith.constant 0 : index
    %c0_15 = arith.constant 0 : index
    %14 = vector.load %arg3[%c0_12, %c0_13, %c0_14, %c0_15] : memref<1x4x16x1xi32, #tpu.memory_space<vmem>>, vector<1x4x16x1xi32>
    %15 = vector.shape_cast %14 : vector<1x4x16x1xi32> to vector<4x16x1xi32>
    %16 = vector.broadcast %13 : vector<1x1x16xi32> to vector<4x16x16xi32>
    %17 = vector.broadcast %15 : vector<4x16x1xi32> to vector<4x16x16xi32>
    %18 = arith.cmpi sle, %16, %17 : vector<4x16x16xi32>
    %cst_16 = arith.constant -1.000000e+30 : f32
    %19 = vector.broadcast %cst_16 : f32 to vector<4x16x16xf32>
    %20 = arith.select %18, %9, %19 : vector<4x16x16xi1>, vector<4x16x16xf32>
    %c0_17 = arith.constant 0 : index
    %c0_18 = arith.constant 0 : index
    %c0_19 = arith.constant 0 : index
    %21 = vector.load %arg8[%c0_17, %c0_18, %c0_19] : memref<4x16x1xf32, #tpu.memory_space<vmem>>, vector<4x16x1xf32>
    %cst_20 = arith.constant dense<0xFF800000> : vector<4x16xf32>
    %22 = vector.multi_reduction <maximumf>, %20, %cst_20 [2] : vector<4x16x16xf32> to vector<4x16xf32>
    %23 = vector.shape_cast %22 : vector<4x16xf32> to vector<4x16x1xf32>
    %24 = arith.maximumf %21, %23 : vector<4x16x1xf32>
    %25 = arith.subf %21, %24 : vector<4x16x1xf32>
    %26 = math.exp %25 : vector<4x16x1xf32>
    %27 = vector.broadcast %24 : vector<4x16x1xf32> to vector<4x16x16xf32>
    %28 = arith.subf %20, %27 : vector<4x16x16xf32>
    %29 = math.exp %28 : vector<4x16x16xf32>
    %c0_21 = arith.constant 0 : index
    %c0_22 = arith.constant 0 : index
    %c0_23 = arith.constant 0 : index
    %30 = vector.load %arg9[%c0_21, %c0_22, %c0_23] : memref<4x16x1xf32, #tpu.memory_space<vmem>>, vector<4x16x1xf32>
    %31 = arith.mulf %26, %30 : vector<4x16x1xf32>
    %cst_24 = arith.constant dense<0.000000e+00> : vector<4x16xf32>
    %32 = vector.multi_reduction <add>, %29, %cst_24 [2] : vector<4x16x16xf32> to vector<4x16xf32>
    %33 = vector.shape_cast %32 : vector<4x16xf32> to vector<4x16x1xf32>
    %34 = arith.addf %31, %33 : vector<4x16x1xf32>
    %c0_25 = arith.constant 0 : index
    %c0_26 = arith.constant 0 : index
    %c0_27 = arith.constant 0 : index
    %35 = vector.load %arg9[%c0_25, %c0_26, %c0_27] : memref<4x16x1xf32, #tpu.memory_space<vmem>>, vector<4x16x1xf32>
    tpu.vector_store %arg9[%c0_25, %c0_26, %c0_27], %34 {strides = array<i32>} : memref<4x16x1xf32, #tpu.memory_space<vmem>>, vector<4x16x1xf32>,
    %c0_28 = arith.constant 0 : index
    %c0_29 = arith.constant 0 : index
    %c0_30 = arith.constant 0 : index
    %36 = vector.load %arg10[%c0_28, %c0_29, %c0_30] : memref<4x16x32xf32, #tpu.memory_space<vmem>>, vector<4x16x32xf32>
    %37 = vector.broadcast %26 : vector<4x16x1xf32> to vector<4x16x32xf32>
    %38 = arith.mulf %37, %36 : vector<4x16x32xf32>
    "tpu.trace_start"() <{level = 10 : i32, message = "huk,hkd->hud"}> : () -> ()
    %cst_31 = arith.constant dense<0.000000e+00> : vector<4x16x32xf32>
    %39 = tpu.matmul %29, %8, %cst_31 {dimension_numbers = #tpu.dot_dimension_numbers<[2], [1], [1], [2], [0, 0, 0, 1, 1, 2], [0], [0]>} : vector<4x16x16xf32>, vector<4x16x32xf32>, vector<4x16x32xf32> -> vector<4x16x32xf32>
    "tpu.trace_stop"() : () -> ()
    %40 = arith.addf %38, %39 : vector<4x16x32xf32>
    %c0_32 = arith.constant 0 : index
    %c0_33 = arith.constant 0 : index
    %c0_34 = arith.constant 0 : index
    %41 = vector.load %arg10[%c0_32, %c0_33, %c0_34] : memref<4x16x32xf32, #tpu.memory_space<vmem>>, vector<4x16x32xf32>
    tpu.vector_store %arg10[%c0_32, %c0_33, %c0_34], %40 {strides = array<i32>} : memref<4x16x32xf32, #tpu.memory_space<vmem>>, vector<4x16x32xf32>,
    %c0_35 = arith.constant 0 : index
    %c0_36 = arith.constant 0 : index
    %c0_37 = arith.constant 0 : index
    %42 = vector.load %arg8[%c0_35, %c0_36, %c0_37] : memref<4x16x1xf32, #tpu.memory_space<vmem>>, vector<4x16x1xf32>
    tpu.vector_store %arg8[%c0_35, %c0_36, %c0_37], %24 {strides = array<i32>} : memref<4x16x1xf32, #tpu.memory_space<vmem>>, vector<4x16x1xf32>,
    %c0_i32_38 = arith.constant 0 : i32
    %43 = arith.cmpi eq, %arg2, %c0_i32_38 : i32
    %44 = arith.extui %43 : i1 to i32
    %c0_i32_39 = arith.constant 0 : i32
    %45 = arith.cmpi ne, %44, %c0_i32_39 : i32
    scf.if %45 {
      %c0_40 = arith.constant 0 : index
      %c0_41 = arith.constant 0 : index
      %c0_42 = arith.constant 0 : index
      %46 = vector.load %arg9[%c0_40, %c0_41, %c0_42] : memref<4x16x1xf32, #tpu.memory_space<vmem>>, vector<4x16x1xf32>
      %47 = tpu.reciprocal %46 {approx = true} : vector<4x16x1xf32> -> vector<4x16x1xf32>
      %c0_43 = arith.constant 0 : index
      %c0_44 = arith.constant 0 : index
      %c0_45 = arith.constant 0 : index
      %48 = vector.load %arg10[%c0_43, %c0_44, %c0_45] : memref<4x16x32xf32, #tpu.memory_space<vmem>>, vector<4x16x32xf32>
      %49 = vector.broadcast %47 : vector<4x16x1xf32> to vector<4x16x32xf32>
      %50 = arith.mulf %48, %49 : vector<4x16x32xf32>
      %c0_46 = arith.constant 0 : index
      %c0_47 = arith.constant 0 : index
      %c0_48 = arith.constant 0 : index
      %c0_49 = arith.constant 0 : index
      %51 = vector.load %arg7[%c0_46, %c0_47, %c0_48, %c0_49] : memref<1x4x16x32xf32, #tpu.memory_space<vmem>>, vector<1x4x16x32xf32>
      %52 = vector.shape_cast %51 : vector<1x4x16x32xf32> to vector<4x16x32xf32>
      %53 = vector.shape_cast %50 : vector<4x16x32xf32> to vector<1x4x16x32xf32>
      tpu.vector_store %arg7[%c0_46, %c0_47, %c0_48, %c0_49], %53 {strides = array<i32>} : memref<1x4x16x32xf32, #tpu.memory_space<vmem>>, vector<1x4x16x32xf32>,
    } else {
    }
    return
  }
  func.func @transform_0(%arg0: i32, %arg1: i32, %arg2: i32) -> (i32, i32, i32, i32) {
    %c0_i32 = arith.constant 0 : i32
    %c0_i32_0 = arith.constant 0 : i32
    %c0_i32_1 = arith.constant 0 : i32
    return %arg0, %arg1, %c0_i32, %c0_i32_0 : i32, i32, i32, i32
  }
  func.func @transform_1(%arg0: i32, %arg1: i32, %arg2: i32) -> (i32, i32, i32, i32) {
    %c0_i32 = arith.constant 0 : i32
    %c0_i32_0 = arith.constant 0 : i32
    %c0_i32_1 = arith.constant 0 : i32
    return %arg0, %arg1, %c0_i32, %c0_i32_0 : i32, i32, i32, i32
  }
  func.func @transform_2(%arg0: i32, %arg1: i32, %arg2: i32) -> (i32, i32, i32, i32) {
    %c0_i32 = arith.constant 0 : i32
    %c0_i32_0 = arith.constant 0 : i32
    return %arg0, %arg1, %c0_i32, %arg2 : i32, i32, i32, i32
  }
  func.func @transform_3(%arg0: i32, %arg1: i32, %arg2: i32) -> (i32, i32, i32, i32) {
    %c0_i32 = arith.constant 0 : i32
    %c0_i32_0 = arith.constant 0 : i32
    return %arg0, %arg1, %arg2, %c0_i32 : i32, i32, i32, i32
  }
  func.func @transform_4(%arg0: i32, %arg1: i32, %arg2: i32) -> (i32, i32, i32, i32) {
    %c0_i32 = arith.constant 0 : i32
    %c0_i32_0 = arith.constant 0 : i32
    %c0_i32_1 = arith.constant 0 : i32
    return %arg0, %arg1, %c0_i32, %c0_i32_0 : i32, i32, i32, i32
  }
}

</mosaic_0001>

<llo_original>
// kernel: tpu_custom_call.1
$region0: #{tpu_custom_call.1}
  #allocation0 [shape = 'u32[]', space=smem, size = 0x4, offset = 0x4, fixed_abs, tag = 'smem constant byte address 0x4 - core index']
  #allocation1 [shape = 'u32[72,128]{1,0:T(1,128)}', space=vmem, size = 0x9000, scoped, tag = 'internal scratch']
  #allocation2 [shape = 'f32[4,16,1]{2,1,0:T(8,128)}', space=vmem, size = 0x8000, scoped, tag = 'scratch operand']
  #allocation3 [shape = 'f32[4,16,1]{2,1,0:T(8,128)}', space=vmem, size = 0x8000, scoped, tag = 'scratch operand']
  #allocation4 [shape = 'f32[4,16,32]{2,1,0:T(8,128)}', space=vmem, size = 0x8000, scoped, tag = 'scratch operand']
  %s0 = inlined_call_operand.vmem [shape: s32[2,4,16,1], index: 0, kind: input, shape index: {}]
  %s1 = inlined_call_operand.vmem [shape: f32[2,4,16,32], index: 1, kind: input, shape index: {}]
  %s2 = inlined_call_operand.vmem [shape: f32[2,4,32,16], index: 2, kind: input, shape index: {}]
  %s3 = inlined_call_operand.vmem [shape: f32[2,4,16,32], index: 3, kind: input, shape index: {}]
  %s4 = inlined_call_operand.hbm [shape: f32[2,4,16,32], index: 4, kind: output, shape index: {}]
  %s5 = sld [smem:[#allocation0]]
  $region57: #{tpu_custom_call.1} parent=0
    _
  %s7 = ssub.s32 1, %s5
  %s8 = scalar_select 0, %s7, %s5
  $region1: #{tpu_custom_call.1} parent=0
    #allocation5 [shape = 'u8[65536]{0}', space=vmem, size = 0x10000, scoped, tag = 'output window, operand 0']
    #allocation6 [shape = 's32[2]{0}', space=sflag, size = 0x8, scoped, tag = 'scoped memory for tpu_custom_call.1']
    %9 = vsyncpa [#allocation6], 0
    %s10 = scalar_lea.sflag [#allocation6], 1
    %11 = vsyncpa %s10, 0
    loop: start=0, step=1, limit=4
    $region2: #{tpu_custom_call.1} parent=1 // loop_pre_header
      _
    $region3: #{tpu_custom_call.1} parent=1 // loop_header
      %s13 = sphi 0, %s17
      %p14 = scmp.ge.s32.totalorder %s13, 4
      %s20 = sphi 0, %s39
      %s21 = sphi 0, %s35
      %s22 = sphi 0, %s31
      %s23 = sphi 0, %s20
      %s24 = sphi 0, %s21
      %s25 = sphi 0, %s22
      %s26 = sphi 0, %s23
      %s27 = sphi 0, %s24
      %s28 = sphi 0, %s25
      %s44 = sphi 0, %s46
      %s47 = sphi 0, %s44
      %s48 = sphi 0, %s47
      %s64 = sphi 0, %s48
      %s72 = sphi 0, %s74
      %s75 = sphi 0, %s72
      %s76 = sphi 0, %s75
      %s92 = sphi 0, %s76
      %s102 = sphi 0, %s104
      %s105 = sphi 0, %s102
      %s106 = sphi 0, %s105
      %s122 = sphi 0, %s106
      %s132 = sphi 0, %s134
      %s135 = sphi 0, %s132
      %s136 = sphi 0, %s135
      %s152 = sphi 0, %s136
      %s160 = sphi 0, %s162
      %s163 = sphi 0, %s160
      %s164 = sphi 0, %s163
      %s180 = sphi 0, %s164
    $region4: #{tpu_custom_call.1} parent=1 // loop_header_branch
      %16 = sbr.rel (%p14) target = $region8
    $region5: #{tpu_custom_call.1} parent=1 // loop_body
      %s18 = ssub.s32 %s13, 1
      %s19 = ssub.s32 %s13, 2
      %s29 = sadd.s32 1, %s22
      %p30 = scmp.ge.s32.totalorder %s29, 1
      %s31 = scalar_select %p30, 0, %s29
      %s32 = sadd.s32 1, %s21
      %s33 = scalar_select %p30, %s32, %s21
      %p34 = scmp.ge.s32.totalorder %s33, 1
      %s35 = scalar_select %p34, 0, %s33
      %s36 = sadd.s32 1, %s20
      %s37 = scalar_select %p34, %s36, %s20
      %p38 = scmp.ge.s32.totalorder %s37, 2
      %s39 = scalar_select %p38, 0, %s37
      %s40 = ssub.s32 %s20, %s39
      %s41 = ssub.s32 %s21, %s35
      %s42 = sor.u32 %s40, %s41
      %p43 = scmp.eq.s32.totalorder %s42, 0
      %s45 = sadd.s32 %s44, 1
      %s46 = scalar_select %p43, %s44, %s45
      %p49 = pneg %p43
      %p50 = scmp.eq.s32.totalorder %s13, 1
      %p51 = por %p49, %p50
      %p52 = scmp.ne.s32.totalorder %s44, %s47
      %p53 = scmp.eq.s32.totalorder %s13, 0
      %p54 = por %p52, %p53
      %p55 = scmp.ne.s32.totalorder %s44, %s47
      %p56 = scmp.eq.s32.totalorder %s18, 1
      %p57 = por %p55, %p56
      %p58 = scmp.ne.s32.totalorder %s47, %s48
      %p59 = scmp.eq.s32.totalorder %s18, 0
      %p60 = por %p58, %p59
      %p61 = scmp.ne.s32.totalorder %s47, %s48
      %p62 = scmp.eq.s32.totalorder %s19, 1
      %p63 = por %p61, %p62
      %p65 = scmp.ne.s32.totalorder %s48, %s64
      %p66 = scmp.eq.s32.totalorder %s19, 0
      %p67 = por %p65, %p66
      %s68 = ssub.s32 %s20, %s39
      %s69 = ssub.s32 %s21, %s35
      %s70 = sor.u32 %s68, %s69
      %p71 = scmp.eq.s32.totalorder %s70, 0
      %s73 = sadd.s32 %s72, 1
      %s74 = scalar_select %p71, %s72, %s73
      %p77 = pneg %p71
      %p78 = scmp.eq.s32.totalorder %s13, 1
      %p79 = por %p77, %p78
      %p80 = scmp.ne.s32.totalorder %s72, %s75
      %p81 = scmp.eq.s32.totalorder %s13, 0
      %p82 = por %p80, %p81
      %p83 = scmp.ne.s32.totalorder %s72, %s75
      %p84 = scmp.eq.s32.totalorder %s18, 1
      %p85 = por %p83, %p84
      %p86 = scmp.ne.s32.totalorder %s75, %s76
      %p87 = scmp.eq.s32.totalorder %s18, 0
      %p88 = por %p86, %p87
      %p89 = scmp.ne.s32.totalorder %s75, %s76
      %p90 = scmp.eq.s32.totalorder %s19, 1
      %p91 = por %p89, %p90
      %p93 = scmp.ne.s32.totalorder %s76, %s92
      %p94 = scmp.eq.s32.totalorder %s19, 0
      %p95 = por %p93, %p94
      %s96 = ssub.s32 %s20, %s39
      %s97 = ssub.s32 %s21, %s35
      %s98 = sor.u32 %s96, %s97
      %s99 = ssub.s32 %s22, %s31
      %s100 = sor.u32 %s98, %s99
      %p101 = scmp.eq.s32.totalorder %s100, 0
      %s103 = sadd.s32 %s102, 1
      %s104 = scalar_select %p101, %s102, %s103
      %p107 = pneg %p101
      %p108 = scmp.eq.s32.totalorder %s13, 1
      %p109 = por %p107, %p108
      %p110 = scmp.ne.s32.totalorder %s102, %s105
      %p111 = scmp.eq.s32.totalorder %s13, 0
      %p112 = por %p110, %p111
      %p113 = scmp.ne.s32.totalorder %s102, %s105
      %p114 = scmp.eq.s32.totalorder %s18, 1
      %p115 = por %p113, %p114
      %p116 = scmp.ne.s32.totalorder %s105, %s106
      %p117 = scmp.eq.s32.totalorder %s18, 0
      %p118 = por %p116, %p117
      %p119 = scmp.ne.s32.totalorder %s105, %s106
      %p120 = scmp.eq.s32.totalorder %s19, 1
      %p121 = por %p119, %p120
      %p123 = scmp.ne.s32.totalorder %s106, %s122
      %p124 = scmp.eq.s32.totalorder %s19, 0
      %p125 = por %p123, %p124
      %s126 = ssub.s32 %s20, %s39
      %s127 = ssub.s32 %s21, %s35
      %s128 = sor.u32 %s126, %s127
      %s129 = ssub.s32 %s22, %s31
      %s130 = sor.u32 %s128, %s129
      %p131 = scmp.eq.s32.totalorder %s130, 0
      %s133 = sadd.s32 %s132, 1
      %s134 = scalar_select %p131, %s132, %s133
      %p137 = pneg %p131
      %p138 = scmp.eq.s32.totalorder %s13, 1
      %p139 = por %p137, %p138
      %p140 = scmp.ne.s32.totalorder %s132, %s135
      %p141 = scmp.eq.s32.totalorder %s13, 0
      %p142 = por %p140, %p141
      %p143 = scmp.ne.s32.totalorder %s132, %s135
      %p144 = scmp.eq.s32.totalorder %s18, 1
      %p145 = por %p143, %p144
      %p146 = scmp.ne.s32.totalorder %s135, %s136
      %p147 = scmp.eq.s32.totalorder %s18, 0
      %p148 = por %p146, %p147
      %p149 = scmp.ne.s32.totalorder %s135, %s136
      %p150 = scmp.eq.s32.totalorder %s19, 1
      %p151 = por %p149, %p150
      %p153 = scmp.ne.s32.totalorder %s136, %s152
      %p154 = scmp.eq.s32.totalorder %s19, 0
      %p155 = por %p153, %p154
      %s156 = ssub.s32 %s20, %s39
      %s157 = ssub.s32 %s21, %s35
      %s158 = sor.u32 %s156, %s157
      %p159 = scmp.eq.s32.totalorder %s158, 0
      %s161 = sadd.s32 %s160, 1
      %s162 = scalar_select %p159, %s160, %s161
      %p165 = pneg %p159
      %p166 = scmp.eq.s32.totalorder %s13, 1
      %p167 = por %p165, %p166
      %p168 = scmp.ne.s32.totalorder %s160, %s163
      %p169 = scmp.eq.s32.totalorder %s13, 0
      %p170 = por %p168, %p169
      %p171 = scmp.ne.s32.totalorder %s160, %s163
      %p172 = scmp.eq.s32.totalorder %s18, 1
      %p173 = por %p171, %p172
      %p174 = scmp.ne.s32.totalorder %s163, %s164
      %p175 = scmp.eq.s32.totalorder %s18, 0
      %p176 = por %p174, %p175
      %p177 = scmp.ne.s32.totalorder %s163, %s164
      %p178 = scmp.eq.s32.totalorder %s19, 1
      %p179 = por %p177, %p178
      %p181 = scmp.ne.s32.totalorder %s164, %s180
      %p182 = scmp.eq.s32.totalorder %s19, 0
      %p183 = por %p181, %p182
      %p184 = scmp.le.s32.totalorder 1, %s13
      %p185 = scmp.lt.s32.totalorder %s13, 3
      %p186 = pnand %p184, %p185
      %p187 = pneg %p186
      // Predicated region
      $region9: #{tpu_custom_call.1} parent=5 // pred_check
        _
      $region10: #{tpu_custom_call.1} parent=5 // pred_check_branch
        %189 = sbr.rel (%p186) target = $region12
      $region11: #{tpu_custom_call.1} parent=5 // pred_region
        %s190 = ssub.s32 %s13, 1
      $region12: #{tpu_custom_call.1} parent=5 // pred_fallthru
        _
      %p191 = scmp.lt.s32.totalorder %s13, 2
      // Predicated region
      $region13: #{tpu_custom_call.1} parent=5 // pred_check
        %p192 = pneg %p191
      $region14: #{tpu_custom_call.1} parent=5 // pred_check_branch
        %194 = sbr.rel (%p192) target = $region16
      $region15: #{tpu_custom_call.1} parent=5 // pred_region
        // Predicated region
        $region17: #{tpu_custom_call.1} parent=15 // pred_check
          %p195 = pneg %p54
        $region18: #{tpu_custom_call.1} parent=15 // pred_check_branch
          %197 = sbr.rel (%p195) target = $region20
        $region19: #{tpu_custom_call.1} parent=15 // pred_region
          %s198 = smul.u32 4, %s21
          %p199 = scmp.lt.s32.totalorder %s20, 1
          %s200 = scalar_select %p199, %s20, 1
          %p201 = scmp.lt.s32.totalorder %s198, 3
          %s202 = scalar_select %p201, %s198, 3
          %s203 = smul.addr %s202, 2
          %s204 = smul.addr %s200, 8
          %s205 = sadd.s32 %s203, %s204
          %s206 = smul.addr %s205, 8
          %s207 = scalar_lea.vmem %s0, %s206
          %s208 = smul.u32 4, %s21
        $region20: #{tpu_custom_call.1} parent=15 // pred_fallthru
          _
        // Predicated region
        $region21: #{tpu_custom_call.1} parent=15 // pred_check
          %p209 = pneg %p82
        $region22: #{tpu_custom_call.1} parent=15 // pred_check_branch
          %211 = sbr.rel (%p209) target = $region24
        $region23: #{tpu_custom_call.1} parent=15 // pred_region
          %s212 = smul.u32 4, %s21
          %p213 = scmp.lt.s32.totalorder %s20, 1
          %s214 = scalar_select %p213, %s20, 1
          %p215 = scmp.lt.s32.totalorder %s212, 3
          %s216 = scalar_select %p215, %s212, 3
          %s217 = smul.addr %s216, 2
          %s218 = smul.addr %s214, 8
          %s219 = sadd.s32 %s217, %s218
          %s220 = smul.addr %s219, 8
          %s221 = scalar_lea.vmem %s1, %s220
          %s222 = smul.u32 4, %s21
        $region24: #{tpu_custom_call.1} parent=15 // pred_fallthru
          _
        // Predicated region
        $region25: #{tpu_custom_call.1} parent=15 // pred_check
          %p223 = pneg %p112
        $region26: #{tpu_custom_call.1} parent=15 // pred_check_branch
          %225 = sbr.rel (%p223) target = $region28
        $region27: #{tpu_custom_call.1} parent=15 // pred_region
          %s226 = smul.u32 4, %s21
          %p227 = scmp.lt.s32.totalorder %s20, 1
          %s228 = scalar_select %p227, %s20, 1
          %p229 = scmp.lt.s32.totalorder %s226, 3
          %s230 = scalar_select %p229, %s226, 3
          %p231 = scmp.lt.s32.totalorder %s22, 0
          %s232 = scalar_select %p231, %s22, 0
          %s233 = smul.addr %s230, 4
          %s234 = sadd.s32 %s232, %s233
          %s235 = smul.addr %s228, 16
          %s236 = sadd.s32 %s234, %s235
          %s237 = smul.addr %s236, 8
          %s238 = scalar_lea.vmem %s2, %s237
          %s239 = smul.u32 4, %s21
        $region28: #{tpu_custom_call.1} parent=15 // pred_fallthru
          _
        // Predicated region
        $region29: #{tpu_custom_call.1} parent=15 // pred_check
          %p240 = pneg %p142
        $region30: #{tpu_custom_call.1} parent=15 // pred_check_branch
          %242 = sbr.rel (%p240) target = $region32
        $region31: #{tpu_custom_call.1} parent=15 // pred_region
          %s243 = smul.u32 4, %s21
          %s244 = smul.u32 2, %s22
          %p245 = scmp.lt.s32.totalorder %s20, 1
          %s246 = scalar_select %p245, %s20, 1
          %p247 = scmp.lt.s32.totalorder %s243, 3
          %s248 = scalar_select %p247, %s243, 3
          %p249 = scmp.lt.s32.totalorder %s244, 1
          %s250 = scalar_select %p249, %s244, 1
          %s251 = smul.addr %s248, 2
          %s252 = sadd.s32 %s250, %s251
          %s253 = smul.addr %s246, 8
          %s254 = sadd.s32 %s252, %s253
          %s255 = smul.addr %s254, 8
          %s256 = scalar_lea.vmem %s3, %s255
          %s257 = smul.u32 4, %s21
          %s258 = smul.u32 2, %s22
        $region32: #{tpu_custom_call.1} parent=15 // pred_fallthru
          _
      $region16: #{tpu_custom_call.1} parent=5 // pred_fallthru
        _
      %p259 = scmp.le.s32.totalorder 1, %s13
      %p260 = scmp.lt.s32.totalorder %s13, 3
      %p261 = pnand %p259, %p260
      %p262 = pneg %p261
      // Predicated region
      $region33: #{tpu_custom_call.1} parent=5 // pred_check
        _
      $region34: #{tpu_custom_call.1} parent=5 // pred_check_branch
        %264 = sbr.rel (%p261) target = $region36
      $region35: #{tpu_custom_call.1} parent=5 // pred_region
        %s265 = ssub.s32 %s13, 1
        %s266 = smul.u32 4, %s24
        %p267 = scmp.lt.s32.totalorder %s23, 1
        %s268 = scalar_select %p267, %s23, 1
        %p269 = scmp.lt.s32.totalorder %s266, 3
        %s270 = scalar_select %p269, %s266, 3
        %s271 = smul.addr %s270, 2
        %s272 = smul.addr %s268, 8
        %s273 = sadd.s32 %s271, %s272
        %s274 = smul.addr %s273, 8
        %s275 = scalar_lea.vmem %s0, %s274
        %p276 = pneg %p60
        %p277 = pneg %p57
        %s278 = smul.u32 4, %s24
        %p279 = scmp.lt.s32.totalorder %s23, 1
        %s280 = scalar_select %p279, %s23, 1
        %p281 = scmp.lt.s32.totalorder %s278, 3
        %s282 = scalar_select %p281, %s278, 3
        %s283 = smul.addr %s282, 2
        %s284 = smul.addr %s280, 8
        %s285 = sadd.s32 %s283, %s284
        %s286 = smul.addr %s285, 8
        %s287 = scalar_lea.vmem %s1, %s286
        %p288 = pneg %p88
        %p289 = pneg %p85
        %s290 = smul.u32 4, %s24
        %p291 = scmp.lt.s32.totalorder %s23, 1
        %s292 = scalar_select %p291, %s23, 1
        %p293 = scmp.lt.s32.totalorder %s290, 3
        %s294 = scalar_select %p293, %s290, 3
        %p295 = scmp.lt.s32.totalorder %s25, 0
        %s296 = scalar_select %p295, %s25, 0
        %s297 = smul.addr %s294, 4
        %s298 = sadd.s32 %s296, %s297
        %s299 = smul.addr %s292, 16
        %s300 = sadd.s32 %s298, %s299
        %s301 = smul.addr %s300, 8
        %s302 = scalar_lea.vmem %s2, %s301
        %p303 = pneg %p118
        %p304 = pneg %p115
        %s305 = smul.u32 4, %s24
        %s306 = smul.u32 2, %s25
        %p307 = scmp.lt.s32.totalorder %s23, 1
        %s308 = scalar_select %p307, %s23, 1
        %p309 = scmp.lt.s32.totalorder %s305, 3
        %s310 = scalar_select %p309, %s305, 3
        %p311 = scmp.lt.s32.totalorder %s306, 1
        %s312 = scalar_select %p311, %s306, 1
        %s313 = smul.addr %s310, 2
        %s314 = sadd.s32 %s312, %s313
        %s315 = smul.addr %s308, 8
        %s316 = sadd.s32 %s314, %s315
        %s317 = smul.addr %s316, 8
        %s318 = scalar_lea.vmem %s3, %s317
        %p319 = pneg %p148
        %p320 = pneg %p145
        %p321 = pneg %p176
        %p322 = pneg %p173
        %s323 = sand.u32 %s163, 1
        %s324 = scalar_lea.sflag [#allocation6], %s323
        %s325 = sand.u32 %s163, 1
        %s326 = smul.addr %s325, 64
        %s327 = scalar_lea.vmem [#allocation5], %s326
        %s328 = smul.u32 4, %s24
        %p329 = scmp.lt.s32.totalorder %s23, 1
        %s330 = scalar_select %p329, %s23, 1
        %p331 = scmp.lt.s32.totalorder %s328, 3
        %s332 = scalar_select %p331, %s328, 3
        %s333 = smul.addr %s332, 2
        %s334 = smul.addr %s330, 8
        %s335 = sadd.s32 %s333, %s334
        %s336 = smul.addr %s335, 8
        %s337 = scalar_lea.vmem %s0, %s336
        %s338 = smul.u32 4, %s24
        %s339 = smul.u32 4, %s24
        %p340 = scmp.lt.s32.totalorder %s23, 1
        %s341 = scalar_select %p340, %s23, 1
        %p342 = scmp.lt.s32.totalorder %s339, 3
        %s343 = scalar_select %p342, %s339, 3
        %s344 = smul.addr %s343, 2
        %s345 = smul.addr %s341, 8
        %s346 = sadd.s32 %s344, %s345
        %s347 = smul.addr %s346, 8
        %s348 = scalar_lea.vmem %s1, %s347
        %s349 = smul.u32 4, %s24
        %s350 = smul.u32 4, %s24
        %p351 = scmp.lt.s32.totalorder %s23, 1
        %s352 = scalar_select %p351, %s23, 1
        %p353 = scmp.lt.s32.totalorder %s350, 3
        %s354 = scalar_select %p353, %s350, 3
        %p355 = scmp.lt.s32.totalorder %s25, 0
        %s356 = scalar_select %p355, %s25, 0
        %s357 = smul.addr %s354, 4
        %s358 = sadd.s32 %s356, %s357
        %s359 = smul.addr %s352, 16
        %s360 = sadd.s32 %s358, %s359
        %s361 = smul.addr %s360, 8
        %s362 = scalar_lea.vmem %s2, %s361
        %s363 = smul.u32 4, %s24
        %s364 = smul.u32 4, %s24
        %s365 = smul.u32 2, %s25
        %p366 = scmp.lt.s32.totalorder %s23, 1
        %s367 = scalar_select %p366, %s23, 1
        %p368 = scmp.lt.s32.totalorder %s364, 3
        %s369 = scalar_select %p368, %s364, 3
        %p370 = scmp.lt.s32.totalorder %s365, 1
        %s371 = scalar_select %p370, %s365, 1
        %s372 = smul.addr %s369, 2
        %s373 = sadd.s32 %s371, %s372
        %s374 = smul.addr %s367, 8
        %s375 = sadd.s32 %s373, %s374
        %s376 = smul.addr %s375, 8
        %s377 = scalar_lea.vmem %s3, %s376
        %s378 = smul.u32 4, %s24
        %s379 = smul.u32 2, %s25
        %s380 = smul.u32 4, %s24
        %p381 = scmp.eq.s32.totalorder %s25, 0
        // Predicated region
        $region37: #{tpu_custom_call.1} parent=35 // pred_check
          %p382 = pneg %p381
        $region38: #{tpu_custom_call.1} parent=35 // pred_check_branch
          %384 = sbr.rel (%p382) target = $region40
        $region39: #{tpu_custom_call.1} parent=35 // pred_region
          %vm385 = vcmask 7168
          %386 = vst.msk [vmem:[#allocation2] sm:$0xff] %vm385, -1e+30
          %387 = vst.msk [vmem:[#allocation2 + $0x8] sm:$0xff] %vm385, -1e+30
          %388 = vst.msk [vmem:[#allocation2 + $0x10] sm:$0xff] %vm385, -1e+30
          %389 = vst.msk [vmem:[#allocation2 + $0x18] sm:$0xff] %vm385, -1e+30
          %390 = vst.msk [vmem:[#allocation2 + $0x20] sm:$0xff] %vm385, -1e+30
          %391 = vst.msk [vmem:[#allocation2 + $0x28] sm:$0xff] %vm385, -1e+30
          %392 = vst.msk [vmem:[#allocation2 + $0x30] sm:$0xff] %vm385, -1e+30
          %393 = vst.msk [vmem:[#allocation2 + $0x38] sm:$0xff] %vm385, -1e+30
          %394 = vst.msk [vmem:[#allocation3] sm:$0xff] %vm385, 0.0
          %395 = vst.msk [vmem:[#allocation3 + $0x8] sm:$0xff] %vm385, 0.0
          %396 = vst.msk [vmem:[#allocation3 + $0x10] sm:$0xff] %vm385, 0.0
          %397 = vst.msk [vmem:[#allocation3 + $0x18] sm:$0xff] %vm385, 0.0
          %398 = vst.msk [vmem:[#allocation3 + $0x20] sm:$0xff] %vm385, 0.0
          %399 = vst.msk [vmem:[#allocation3 + $0x28] sm:$0xff] %vm385, 0.0
          %400 = vst.msk [vmem:[#allocation3 + $0x30] sm:$0xff] %vm385, 0.0
          %401 = vst.msk [vmem:[#allocation3 + $0x38] sm:$0xff] %vm385, 0.0
          %vm402 = vcmask 261120
          %403 = vst.msk [vmem:[#allocation4] sm:$0xff] %vm402, 0.0
          %404 = vst.msk [vmem:[#allocation4 + $0x8] sm:$0xff] %vm402, 0.0
          %405 = vst.msk [vmem:[#allocation4 + $0x10] sm:$0xff] %vm402, 0.0
          %406 = vst.msk [vmem:[#allocation4 + $0x18] sm:$0xff] %vm402, 0.0
          %407 = vst.msk [vmem:[#allocation4 + $0x20] sm:$0xff] %vm402, 0.0
          %408 = vst.msk [vmem:[#allocation4 + $0x28] sm:$0xff] %vm402, 0.0
          %409 = vst.msk [vmem:[#allocation4 + $0x30] sm:$0xff] %vm402, 0.0
          %410 = vst.msk [vmem:[#allocation4 + $0x38] sm:$0xff] %vm402, 0.0
        $region40: #{tpu_custom_call.1} parent=35 // pred_fallthru
          _
        %v411 = vld [vmem:[%s348] sm:$0xff]
        %v412 = vld [vmem:[%s348 + $0x8] sm:$0xff]
        %v413 = vld [vmem:[%s348 + $0x10] sm:$0xff]
        %v414 = vld [vmem:[%s348 + $0x18] sm:$0xff]
        %v415 = vld [vmem:[%s348 + $0x20] sm:$0xff]
        %v416 = vld [vmem:[%s348 + $0x28] sm:$0xff]
        %v417 = vld [vmem:[%s348 + $0x30] sm:$0xff]
        %v418 = vld [vmem:[%s348 + $0x38] sm:$0xff]
        %v419 = vld [vmem:[%s362] sm:$0xff]
        %v420 = vld [vmem:[%s362 + $0x8] sm:$0xff]
        %v421 = vld [vmem:[%s362 + $0x10] sm:$0xff]
        %v422 = vld [vmem:[%s362 + $0x18] sm:$0xff]
        %v423 = vld [vmem:[%s362 + $0x20] sm:$0xff]
        %v424 = vld [vmem:[%s362 + $0x28] sm:$0xff]
        %v425 = vld [vmem:[%s362 + $0x30] sm:$0xff]
        %v426 = vld [vmem:[%s362 + $0x38] sm:$0xff]
        %v427 = vld [vmem:[%s362 + $0x40] sm:$0xff]
        %v428 = vld [vmem:[%s362 + $0x48] sm:$0xff]
        %v429 = vld [vmem:[%s362 + $0x50] sm:$0xff]
        %v430 = vld [vmem:[%s362 + $0x58] sm:$0xff]
        %v431 = vld [vmem:[%s362 + $0x60] sm:$0xff]
        %v432 = vld [vmem:[%s362 + $0x68] sm:$0xff]
        %v433 = vld [vmem:[%s362 + $0x70] sm:$0xff]
        %v434 = vld [vmem:[%s362 + $0x78] sm:$0xff]
        %v435 = vld [vmem:[%s377] sm:$0xff]
        %v436 = vld [vmem:[%s377 + $0x8] sm:$0xff]
        %v437 = vld [vmem:[%s377 + $0x10] sm:$0xff]
        %v438 = vld [vmem:[%s377 + $0x18] sm:$0xff]
        %v439 = vld [vmem:[%s377 + $0x20] sm:$0xff]
        %v440 = vld [vmem:[%s377 + $0x28] sm:$0xff]
        %v441 = vld [vmem:[%s377 + $0x30] sm:$0xff]
        %v442 = vld [vmem:[%s377 + $0x38] sm:$0xff]
        %vm443 = vcmask 261120
        %v445 = vsel %vm443, %v411, 0
        %v448 = vsel %vm443, %v412, 0
        %450 = vmatpush.msra.mxu0 0.0
        %451 = vmatpush.msra.mxu0 0.0
        %452 = vmatpush.msra.mxu0 0.0
        %453 = vmatpush.msra.mxu0 0.0
        %454 = vmatpush.msra.mxu0 0.0
        %455 = vmatpush.msra.mxu0 0.0
        %456 = vmatpush.msra.mxu0 0.0
        %457 = vmatpush.msra.mxu0 0.0
        %458 = vmatpush.msra.mxu0 0.0
        %459 = vmatpush.msra.mxu0 0.0
        %460 = vmatpush.msra.mxu0 0.0
        %461 = vmatpush.msra.mxu0 0.0
        %462 = vmatpush.msra.mxu0 %v422
        %463 = vmatpush.msra.mxu0 %v421
        %464 = vmatpush.msra.mxu0 %v420
        %465 = vmatpush.msra.mxu0 %v419
        %466 = vmatmul.f32.gmra.mxu0 %v445
        %v467 = vpop.f32.mrf.mxu0
        %v468 = vadd.f32 0.0, %v467
        %469 = vmatmul.f32.gmra.mxu0 %v448
        %v470 = vpop.f32.mrf.mxu0
        %v471 = vadd.f32 0.0, %v470
        %472 = vdwg.mxu0
        %v474 = vsel %vm443, %v413, 0
        %v477 = vsel %vm443, %v414, 0
        %479 = vmatpush.msra.mxu0 0.0
        %480 = vmatpush.msra.mxu0 0.0
        %481 = vmatpush.msra.mxu0 0.0
        %482 = vmatpush.msra.mxu0 0.0
        %483 = vmatpush.msra.mxu0 0.0
        %484 = vmatpush.msra.mxu0 0.0
        %485 = vmatpush.msra.mxu0 0.0
        %486 = vmatpush.msra.mxu0 0.0
        %487 = vmatpush.msra.mxu0 0.0
        %488 = vmatpush.msra.mxu0 0.0
        %489 = vmatpush.msra.mxu0 0.0
        %490 = vmatpush.msra.mxu0 0.0
        %491 = vmatpush.msra.mxu0 %v426
        %492 = vmatpush.msra.mxu0 %v425
        %493 = vmatpush.msra.mxu0 %v424
        %494 = vmatpush.msra.mxu0 %v423
        %495 = vmatmul.f32.gmra.mxu0 %v474
        %v496 = vpop.f32.mrf.mxu0
        %v497 = vadd.f32 0.0, %v496
        %498 = vmatmul.f32.gmra.mxu0 %v477
        %v499 = vpop.f32.mrf.mxu0
        %v500 = vadd.f32 0.0, %v499
        %501 = vdwg.mxu0
        %v503 = vsel %vm443, %v415, 0
        %v506 = vsel %vm443, %v416, 0
        %508 = vmatpush.msra.mxu0 0.0
        %509 = vmatpush.msra.mxu0 0.0
        %510 = vmatpush.msra.mxu0 0.0
        %511 = vmatpush.msra.mxu0 0.0
        %512 = vmatpush.msra.mxu0 0.0
        %513 = vmatpush.msra.mxu0 0.0
        %514 = vmatpush.msra.mxu0 0.0
        %515 = vmatpush.msra.mxu0 0.0
        %516 = vmatpush.msra.mxu0 0.0
        %517 = vmatpush.msra.mxu0 0.0
        %518 = vmatpush.msra.mxu0 0.0
        %519 = vmatpush.msra.mxu0 0.0
        %520 = vmatpush.msra.mxu0 %v430
        %521 = vmatpush.msra.mxu0 %v429
        %522 = vmatpush.msra.mxu0 %v428
        %523 = vmatpush.msra.mxu0 %v427
        %524 = vmatmul.f32.gmra.mxu0 %v503
        %v525 = vpop.f32.mrf.mxu0
        %v526 = vadd.f32 0.0, %v525
        %527 = vmatmul.f32.gmra.mxu0 %v506
        %v528 = vpop.f32.mrf.mxu0
        %v529 = vadd.f32 0.0, %v528
        %530 = vdwg.mxu0
        %v532 = vsel %vm443, %v417, 0
        %v535 = vsel %vm443, %v418, 0
        %537 = vmatpush.msra.mxu0 0.0
        %538 = vmatpush.msra.mxu0 0.0
        %539 = vmatpush.msra.mxu0 0.0
        %540 = vmatpush.msra.mxu0 0.0
        %541 = vmatpush.msra.mxu0 0.0
        %542 = vmatpush.msra.mxu0 0.0
        %543 = vmatpush.msra.mxu0 0.0
        %544 = vmatpush.msra.mxu0 0.0
        %545 = vmatpush.msra.mxu0 0.0
        %546 = vmatpush.msra.mxu0 0.0
        %547 = vmatpush.msra.mxu0 0.0
        %548 = vmatpush.msra.mxu0 0.0
        %549 = vmatpush.msra.mxu0 %v434
        %550 = vmatpush.msra.mxu0 %v433
        %551 = vmatpush.msra.mxu0 %v432
        %552 = vmatpush.msra.mxu0 %v431
        %553 = vmatmul.f32.gmra.mxu0 %v532
        %v554 = vpop.f32.mrf.mxu0
        %v555 = vadd.f32 0.0, %v554
        %556 = vmatmul.f32.gmra.mxu0 %v535
        %v557 = vpop.f32.mrf.mxu0
        %v558 = vadd.f32 0.0, %v557
        %559 = vdwg.mxu0
        %s560 = smul.u32 %s25, 16
        %v561 = vlaneseq
        %v562 = vand.u32 %v561, 127
        %v563 = vstv %s560
        %v564 = vadd.s32 %v563, %v562
        %v565 = vld [vmem:[%s337] sm:$0xff]
        %v566 = vld [vmem:[%s337 + $0x8] sm:$0xff]
        %v567 = vld [vmem:[%s337 + $0x10] sm:$0xff]
        %v568 = vld [vmem:[%s337 + $0x18] sm:$0xff]
        %v569 = vld [vmem:[%s337 + $0x20] sm:$0xff]
        %v570 = vld [vmem:[%s337 + $0x28] sm:$0xff]
        %v571 = vld [vmem:[%s337 + $0x30] sm:$0xff]
        %v572 = vld [vmem:[%s337 + $0x38] sm:$0xff]
        %573 = vset.pattern.permute.xlu0 0
        %574 = vperm.xlu0 %573, %v565
        %v575 = vpop.permute.xlu0 %574
        %576 = vset.pattern.permute.xlu0 0
        %577 = vperm.xlu0 %576, %v566
        %v578 = vpop.permute.xlu0 %577
        %579 = vset.pattern.permute.xlu0 0
        %580 = vperm.xlu0 %579, %v567
        %v581 = vpop.permute.xlu0 %580
        %582 = vset.pattern.permute.xlu0 0
        %583 = vperm.xlu0 %582, %v568
        %v584 = vpop.permute.xlu0 %583
        %585 = vset.pattern.permute.xlu0 0
        %586 = vperm.xlu0 %585, %v569
        %v587 = vpop.permute.xlu0 %586
        %588 = vset.pattern.permute.xlu0 0
        %589 = vperm.xlu0 %588, %v570
        %v590 = vpop.permute.xlu0 %589
        %591 = vset.pattern.permute.xlu0 0
        %592 = vperm.xlu0 %591, %v571
        %v593 = vpop.permute.xlu0 %592
        %594 = vset.pattern.permute.xlu0 0
        %595 = vperm.xlu0 %594, %v572
        %v596 = vpop.permute.xlu0 %595
        %vm597 = vcmp.le.s32.totalorder %v564, %v575
        %vm598 = vcmp.le.s32.totalorder %v564, %v578
        %vm599 = vcmp.le.s32.totalorder %v564, %v581
        %vm600 = vcmp.le.s32.totalorder %v564, %v584
        %vm601 = vcmp.le.s32.totalorder %v564, %v587
        %vm602 = vcmp.le.s32.totalorder %v564, %v590
        %vm603 = vcmp.le.s32.totalorder %v564, %v593
        %vm604 = vcmp.le.s32.totalorder %v564, %v596
        %v605 = vsel %vm597, %v468, -1e+30
        %v606 = vsel %vm598, %v471, -1e+30
        %v607 = vsel %vm599, %v497, -1e+30
        %v608 = vsel %vm600, %v500, -1e+30
        %v609 = vsel %vm601, %v526, -1e+30
        %v610 = vsel %vm602, %v529, -1e+30
        %v611 = vsel %vm603, %v555, -1e+30
        %v612 = vsel %vm604, %v558, -1e+30
        %v613 = vld [vmem:[#allocation2] sm:$0xff]
        %v614 = vld [vmem:[#allocation2 + $0x8] sm:$0xff]
        %v615 = vld [vmem:[#allocation2 + $0x10] sm:$0xff]
        %v616 = vld [vmem:[#allocation2 + $0x18] sm:$0xff]
        %v617 = vld [vmem:[#allocation2 + $0x20] sm:$0xff]
        %v618 = vld [vmem:[#allocation2 + $0x28] sm:$0xff]
        %v619 = vld [vmem:[#allocation2 + $0x30] sm:$0xff]
        %v620 = vld [vmem:[#allocation2 + $0x38] sm:$0xff]
        %vm621 = vcmask 130048
        %v622 = vsel %vm621, %v605, -inf
        %623 = vmax.xlane.f32.xlu0 %v622
        %v624 = vpop.xlane.xlu0 %623
        %v625 = vsel %vm621, %v606, -inf
        %626 = vmax.xlane.f32.xlu0 %v625
        %v627 = vpop.xlane.xlu0 %626
        %v628 = vsel %vm621, %v607, -inf
        %629 = vmax.xlane.f32.xlu0 %v628
        %v630 = vpop.xlane.xlu0 %629
        %v631 = vsel %vm621, %v608, -inf
        %632 = vmax.xlane.f32.xlu0 %v631
        %v633 = vpop.xlane.xlu0 %632
        %v634 = vsel %vm621, %v609, -inf
        %635 = vmax.xlane.f32.xlu0 %v634
        %v636 = vpop.xlane.xlu0 %635
        %v637 = vsel %vm621, %v610, -inf
        %638 = vmax.xlane.f32.xlu0 %v637
        %v639 = vpop.xlane.xlu0 %638
        %v640 = vsel %vm621, %v611, -inf
        %641 = vmax.xlane.f32.xlu0 %v640
        %v642 = vpop.xlane.xlu0 %641
        %v643 = vsel %vm621, %v612, -inf
        %644 = vmax.xlane.f32.xlu0 %v643
        %v645 = vpop.xlane.xlu0 %644
        %v646 = vmax.f32 %v613, %v624
        %v647 = vmax.f32 %v614, %v627
        %v648 = vmax.f32 %v615, %v630
        %v649 = vmax.f32 %v616, %v633
        %v650 = vmax.f32 %v617, %v636
        %v651 = vmax.f32 %v618, %v639
        %v652 = vmax.f32 %v619, %v642
        %v653 = vmax.f32 %v620, %v645
        %v654 = vsub.f32 %v613, %v646
        %v655 = vsub.f32 %v614, %v647
        %v656 = vsub.f32 %v615, %v648
        %v657 = vsub.f32 %v616, %v649
        %v658 = vsub.f32 %v617, %v650
        %v659 = vsub.f32 %v618, %v651
        %v660 = vsub.f32 %v619, %v652
        %v661 = vsub.f32 %v620, %v653
        %v662 = vmul.f32 %v654, 1.442695
        %v663 = vpow.pop %v662
        %v664 = vmul.f32 %v655, 1.442695
        %v665 = vpow.pop %v664
        %v666 = vmul.f32 %v656, 1.442695
        %v667 = vpow.pop %v666
        %v668 = vmul.f32 %v657, 1.442695
        %v669 = vpow.pop %v668
        %v670 = vmul.f32 %v658, 1.442695
        %v671 = vpow.pop %v670
        %v672 = vmul.f32 %v659, 1.442695
        %v673 = vpow.pop %v672
        %v674 = vmul.f32 %v660, 1.442695
        %v675 = vpow.pop %v674
        %v676 = vmul.f32 %v661, 1.442695
        %v677 = vpow.pop %v676
        %679 = vset.pattern.permute.xlu0 0
        %680 = vperm.xlu0 %679, %v646
        %v681 = vpop.permute.xlu0 %680
        %684 = vset.pattern.permute.xlu0 0
        %685 = vperm.xlu0 %684, %v647
        %v686 = vpop.permute.xlu0 %685
        %689 = vset.pattern.permute.xlu0 0
        %690 = vperm.xlu0 %689, %v648
        %v691 = vpop.permute.xlu0 %690
        %694 = vset.pattern.permute.xlu0 0
        %695 = vperm.xlu0 %694, %v649
        %v696 = vpop.permute.xlu0 %695
        %699 = vset.pattern.permute.xlu0 0
        %700 = vperm.xlu0 %699, %v650
        %v701 = vpop.permute.xlu0 %700
        %704 = vset.pattern.permute.xlu0 0
        %705 = vperm.xlu0 %704, %v651
        %v706 = vpop.permute.xlu0 %705
        %709 = vset.pattern.permute.xlu0 0
        %710 = vperm.xlu0 %709, %v652
        %v711 = vpop.permute.xlu0 %710
        %714 = vset.pattern.permute.xlu0 0
        %715 = vperm.xlu0 %714, %v653
        %v716 = vpop.permute.xlu0 %715
        %v718 = vsub.f32 %v605, %v681
        %v719 = vsub.f32 %v606, %v686
        %v720 = vsub.f32 %v607, %v691
        %v721 = vsub.f32 %v608, %v696
        %v722 = vsub.f32 %v609, %v701
        %v723 = vsub.f32 %v610, %v706
        %v724 = vsub.f32 %v611, %v711
        %v725 = vsub.f32 %v612, %v716
        %v726 = vmul.f32 %v718, 1.442695
        %v727 = vpow.pop %v726
        %v728 = vmul.f32 %v719, 1.442695
        %v729 = vpow.pop %v728
        %v730 = vmul.f32 %v720, 1.442695
        %v731 = vpow.pop %v730
        %v732 = vmul.f32 %v721, 1.442695
        %v733 = vpow.pop %v732
        %v734 = vmul.f32 %v722, 1.442695
        %v735 = vpow.pop %v734
        %v736 = vmul.f32 %v723, 1.442695
        %v737 = vpow.pop %v736
        %v738 = vmul.f32 %v724, 1.442695
        %v739 = vpow.pop %v738
        %v740 = vmul.f32 %v725, 1.442695
        %v741 = vpow.pop %v740
        %v742 = vld [vmem:[#allocation3] sm:$0xff]
        %v743 = vld [vmem:[#allocation3 + $0x8] sm:$0xff]
        %v744 = vld [vmem:[#allocation3 + $0x10] sm:$0xff]
        %v745 = vld [vmem:[#allocation3 + $0x18] sm:$0xff]
        %v746 = vld [vmem:[#allocation3 + $0x20] sm:$0xff]
        %v747 = vld [vmem:[#allocation3 + $0x28] sm:$0xff]
        %v748 = vld [vmem:[#allocation3 + $0x30] sm:$0xff]
        %v749 = vld [vmem:[#allocation3 + $0x38] sm:$0xff]
        %v750 = vmul.f32 %v663, %v742
        %v751 = vmul.f32 %v665, %v743
        %v752 = vmul.f32 %v667, %v744
        %v753 = vmul.f32 %v669, %v745
        %v754 = vmul.f32 %v671, %v746
        %v755 = vmul.f32 %v673, %v747
        %v756 = vmul.f32 %v675, %v748
        %v757 = vmul.f32 %v677, %v749
        %v758 = vsel %vm621, %v727, 0.0
        %759 = vadd.xlane.f32.xlu0 %v758
        %v760 = vpop.xlane.xlu0 %759
        %v761 = vsel %vm621, %v729, 0.0
        %762 = vadd.xlane.f32.xlu0 %v761
        %v763 = vpop.xlane.xlu0 %762
        %v764 = vsel %vm621, %v731, 0.0
        %765 = vadd.xlane.f32.xlu0 %v764
        %v766 = vpop.xlane.xlu0 %765
        %v767 = vsel %vm621, %v733, 0.0
        %768 = vadd.xlane.f32.xlu0 %v767
        %v769 = vpop.xlane.xlu0 %768
        %v770 = vsel %vm621, %v735, 0.0
        %771 = vadd.xlane.f32.xlu0 %v770
        %v772 = vpop.xlane.xlu0 %771
        %v773 = vsel %vm621, %v737, 0.0
        %774 = vadd.xlane.f32.xlu0 %v773
        %v775 = vpop.xlane.xlu0 %774
        %v776 = vsel %vm621, %v739, 0.0
        %777 = vadd.xlane.f32.xlu0 %v776
        %v778 = vpop.xlane.xlu0 %777
        %v779 = vsel %vm621, %v741, 0.0
        %780 = vadd.xlane.f32.xlu0 %v779
        %v781 = vpop.xlane.xlu0 %780
        %v782 = vadd.f32 %v750, %v760
        %v783 = vadd.f32 %v751, %v763
        %v784 = vadd.f32 %v752, %v766
        %v785 = vadd.f32 %v753, %v769
        %v786 = vadd.f32 %v754, %v772
        %v787 = vadd.f32 %v755, %v775
        %v788 = vadd.f32 %v756, %v778
        %v789 = vadd.f32 %v757, %v781
        %vm790 = vcmask 7168
        %791 = vst.msk [vmem:[#allocation3] sm:$0xff] %vm790, %v782
        %792 = vst.msk [vmem:[#allocation3 + $0x8] sm:$0xff] %vm790, %v783
        %793 = vst.msk [vmem:[#allocation3 + $0x10] sm:$0xff] %vm790, %v784
        %794 = vst.msk [vmem:[#allocation3 + $0x18] sm:$0xff] %vm790, %v785
        %795 = vst.msk [vmem:[#allocation3 + $0x20] sm:$0xff] %vm790, %v786
        %796 = vst.msk [vmem:[#allocation3 + $0x28] sm:$0xff] %vm790, %v787
        %797 = vst.msk [vmem:[#allocation3 + $0x30] sm:$0xff] %vm790, %v788
        %798 = vst.msk [vmem:[#allocation3 + $0x38] sm:$0xff] %vm790, %v789
        %v799 = vld [vmem:[#allocation4] sm:$0xff]
        %v800 = vld [vmem:[#allocation4 + $0x8] sm:$0xff]
        %v801 = vld [vmem:[#allocation4 + $0x10] sm:$0xff]
        %v802 = vld [vmem:[#allocation4 + $0x18] sm:$0xff]
        %v803 = vld [vmem:[#allocation4 + $0x20] sm:$0xff]
        %v804 = vld [vmem:[#allocation4 + $0x28] sm:$0xff]
        %v805 = vld [vmem:[#allocation4 + $0x30] sm:$0xff]
        %v806 = vld [vmem:[#allocation4 + $0x38] sm:$0xff]
        %808 = vset.pattern.permute.xlu0 0
        %809 = vperm.xlu0 %808, %v663
        %v810 = vpop.permute.xlu0 %809
        %813 = vset.pattern.permute.xlu0 0
        %814 = vperm.xlu0 %813, %v665
        %v815 = vpop.permute.xlu0 %814
        %818 = vset.pattern.permute.xlu0 0
        %819 = vperm.xlu0 %818, %v667
        %v820 = vpop.permute.xlu0 %819
        %823 = vset.pattern.permute.xlu0 0
        %824 = vperm.xlu0 %823, %v669
        %v825 = vpop.permute.xlu0 %824
        %828 = vset.pattern.permute.xlu0 0
        %829 = vperm.xlu0 %828, %v671
        %v830 = vpop.permute.xlu0 %829
        %833 = vset.pattern.permute.xlu0 0
        %834 = vperm.xlu0 %833, %v673
        %v835 = vpop.permute.xlu0 %834
        %838 = vset.pattern.permute.xlu0 0
        %839 = vperm.xlu0 %838, %v675
        %v840 = vpop.permute.xlu0 %839
        %843 = vset.pattern.permute.xlu0 0
        %844 = vperm.xlu0 %843, %v677
        %v845 = vpop.permute.xlu0 %844
        %v847 = vmul.f32 %v810, %v799
        %v848 = vmul.f32 %v815, %v800
        %v849 = vmul.f32 %v820, %v801
        %v850 = vmul.f32 %v825, %v802
        %v851 = vmul.f32 %v830, %v803
        %v852 = vmul.f32 %v835, %v804
        %v853 = vmul.f32 %v840, %v805
        %v854 = vmul.f32 %v845, %v806
        %v856 = vsel %vm621, %v727, 0
        %v859 = vsel %vm621, %v729, 0
        %861 = vmatpush.msra.mxu0 0.0
        %862 = vmatpush.msra.mxu0 0.0
        %863 = vmatpush.msra.mxu0 0.0
        %864 = vmatpush.msra.mxu0 0.0
        %865 = vmatpush.msra.mxu0 0.0
        %866 = vmatpush.msra.mxu0 0.0
        %867 = vmatpush.msra.mxu0 0.0
        %868 = vmatpush.msra.mxu0 0.0
        %869 = vmatpush.msra.mxu0 0.0
        %870 = vmatpush.msra.mxu0 0.0
        %871 = vmatpush.msra.mxu0 0.0
        %872 = vmatpush.msra.mxu0 0.0
        %873 = vmatpush.msra.mxu0 0.0
        %874 = vmatpush.msra.mxu0 0.0
        %875 = vmatpush.msra.mxu0 %v436
        %876 = vmatpush.msra.mxu0 %v435
        %877 = vmatmul.f32.gmra.mxu0 %v856
        %v878 = vpop.f32.mrf.mxu0
        %v879 = vadd.f32 0.0, %v878
        %880 = vmatmul.f32.gmra.mxu0 %v859
        %v881 = vpop.f32.mrf.mxu0
        %v882 = vadd.f32 0.0, %v881
        %883 = vdwg.mxu0
        %v885 = vsel %vm621, %v731, 0
        %v888 = vsel %vm621, %v733, 0
        %890 = vmatpush.msra.mxu0 0.0
        %891 = vmatpush.msra.mxu0 0.0
        %892 = vmatpush.msra.mxu0 0.0
        %893 = vmatpush.msra.mxu0 0.0
        %894 = vmatpush.msra.mxu0 0.0
        %895 = vmatpush.msra.mxu0 0.0
        %896 = vmatpush.msra.mxu0 0.0
        %897 = vmatpush.msra.mxu0 0.0
        %898 = vmatpush.msra.mxu0 0.0
        %899 = vmatpush.msra.mxu0 0.0
        %900 = vmatpush.msra.mxu0 0.0
        %901 = vmatpush.msra.mxu0 0.0
        %902 = vmatpush.msra.mxu0 0.0
        %903 = vmatpush.msra.mxu0 0.0
        %904 = vmatpush.msra.mxu0 %v438
        %905 = vmatpush.msra.mxu0 %v437
        %906 = vmatmul.f32.gmra.mxu0 %v885
        %v907 = vpop.f32.mrf.mxu0
        %v908 = vadd.f32 0.0, %v907
        %909 = vmatmul.f32.gmra.mxu0 %v888
        %v910 = vpop.f32.mrf.mxu0
        %v911 = vadd.f32 0.0, %v910
        %912 = vdwg.mxu0
        %v914 = vsel %vm621, %v735, 0
        %v917 = vsel %vm621, %v737, 0
        %919 = vmatpush.msra.mxu0 0.0
        %920 = vmatpush.msra.mxu0 0.0
        %921 = vmatpush.msra.mxu0 0.0
        %922 = vmatpush.msra.mxu0 0.0
        %923 = vmatpush.msra.mxu0 0.0
        %924 = vmatpush.msra.mxu0 0.0
        %925 = vmatpush.msra.mxu0 0.0
        %926 = vmatpush.msra.mxu0 0.0
        %927 = vmatpush.msra.mxu0 0.0
        %928 = vmatpush.msra.mxu0 0.0
        %929 = vmatpush.msra.mxu0 0.0
        %930 = vmatpush.msra.mxu0 0.0
        %931 = vmatpush.msra.mxu0 0.0
        %932 = vmatpush.msra.mxu0 0.0
        %933 = vmatpush.msra.mxu0 %v440
        %934 = vmatpush.msra.mxu0 %v439
        %935 = vmatmul.f32.gmra.mxu0 %v914
        %v936 = vpop.f32.mrf.mxu0
        %v937 = vadd.f32 0.0, %v936
        %938 = vmatmul.f32.gmra.mxu0 %v917
        %v939 = vpop.f32.mrf.mxu0
        %v940 = vadd.f32 0.0, %v939
        %941 = vdwg.mxu0
        %v943 = vsel %vm621, %v739, 0
        %v946 = vsel %vm621, %v741, 0
        %948 = vmatpush.msra.mxu0 0.0
        %949 = vmatpush.msra.mxu0 0.0
        %950 = vmatpush.msra.mxu0 0.0
        %951 = vmatpush.msra.mxu0 0.0
        %952 = vmatpush.msra.mxu0 0.0
        %953 = vmatpush.msra.mxu0 0.0
        %954 = vmatpush.msra.mxu0 0.0
        %955 = vmatpush.msra.mxu0 0.0
        %956 = vmatpush.msra.mxu0 0.0
        %957 = vmatpush.msra.mxu0 0.0
        %958 = vmatpush.msra.mxu0 0.0
        %959 = vmatpush.msra.mxu0 0.0
        %960 = vmatpush.msra.mxu0 0.0
        %961 = vmatpush.msra.mxu0 0.0
        %962 = vmatpush.msra.mxu0 %v442
        %963 = vmatpush.msra.mxu0 %v441
        %964 = vmatmul.f32.gmra.mxu0 %v943
        %v965 = vpop.f32.mrf.mxu0
        %v966 = vadd.f32 0.0, %v965
        %967 = vmatmul.f32.gmra.mxu0 %v946
        %v968 = vpop.f32.mrf.mxu0
        %v969 = vadd.f32 0.0, %v968
        %970 = vdwg.mxu0
        %v971 = vadd.f32 %v847, %v879
        %v972 = vadd.f32 %v848, %v882
        %v973 = vadd.f32 %v849, %v908
        %v974 = vadd.f32 %v850, %v911
        %v975 = vadd.f32 %v851, %v937
        %v976 = vadd.f32 %v852, %v940
        %v977 = vadd.f32 %v853, %v966
        %v978 = vadd.f32 %v854, %v969
        %979 = vst.msk [vmem:[#allocation4] sm:$0xff] %vm443, %v971
        %980 = vst.msk [vmem:[#allocation4 + $0x8] sm:$0xff] %vm443, %v972
        %981 = vst.msk [vmem:[#allocation4 + $0x10] sm:$0xff] %vm443, %v973
        %982 = vst.msk [vmem:[#allocation4 + $0x18] sm:$0xff] %vm443, %v974
        %983 = vst.msk [vmem:[#allocation4 + $0x20] sm:$0xff] %vm443, %v975
        %984 = vst.msk [vmem:[#allocation4 + $0x28] sm:$0xff] %vm443, %v976
        %985 = vst.msk [vmem:[#allocation4 + $0x30] sm:$0xff] %vm443, %v977
        %986 = vst.msk [vmem:[#allocation4 + $0x38] sm:$0xff] %vm443, %v978
        %987 = vst.msk [vmem:[#allocation2] sm:$0xff] %vm790, %v646
        %988 = vst.msk [vmem:[#allocation2 + $0x8] sm:$0xff] %vm790, %v647
        %989 = vst.msk [vmem:[#allocation2 + $0x10] sm:$0xff] %vm790, %v648
        %990 = vst.msk [vmem:[#allocation2 + $0x18] sm:$0xff] %vm790, %v649
        %991 = vst.msk [vmem:[#allocation2 + $0x20] sm:$0xff] %vm790, %v650
        %992 = vst.msk [vmem:[#allocation2 + $0x28] sm:$0xff] %vm790, %v651
        %993 = vst.msk [vmem:[#allocation2 + $0x30] sm:$0xff] %vm790, %v652
        %994 = vst.msk [vmem:[#allocation2 + $0x38] sm:$0xff] %vm790, %v653
        // Predicated region
        $region41: #{tpu_custom_call.1} parent=35 // pred_check
          %p995 = pneg %p381
        $region42: #{tpu_custom_call.1} parent=35 // pred_check_branch
          %997 = sbr.rel (%p995) target = $region44
        $region43: #{tpu_custom_call.1} parent=35 // pred_region
          %v998 = vld [vmem:[#allocation3] sm:$0xff]
          %v999 = vld [vmem:[#allocation3 + $0x8] sm:$0xff]
          %v1000 = vld [vmem:[#allocation3 + $0x10] sm:$0xff]
          %v1001 = vld [vmem:[#allocation3 + $0x18] sm:$0xff]
          %v1002 = vld [vmem:[#allocation3 + $0x20] sm:$0xff]
          %v1003 = vld [vmem:[#allocation3 + $0x28] sm:$0xff]
          %v1004 = vld [vmem:[#allocation3 + $0x30] sm:$0xff]
          %v1005 = vld [vmem:[#allocation3 + $0x38] sm:$0xff]
          %v1006 = vrcp.pop %v998
          %v1007 = vrcp.pop %v999
          %v1008 = vrcp.pop %v1000
          %v1009 = vrcp.pop %v1001
          %v1010 = vrcp.pop %v1002
          %v1011 = vrcp.pop %v1003
          %v1012 = vrcp.pop %v1004
          %v1013 = vrcp.pop %v1005
          %v1014 = vld [vmem:[#allocation4] sm:$0xff]
          %v1015 = vld [vmem:[#allocation4 + $0x8] sm:$0xff]
          %v1016 = vld [vmem:[#allocation4 + $0x10] sm:$0xff]
          %v1017 = vld [vmem:[#allocation4 + $0x18] sm:$0xff]
          %v1018 = vld [vmem:[#allocation4 + $0x20] sm:$0xff]
          %v1019 = vld [vmem:[#allocation4 + $0x28] sm:$0xff]
          %v1020 = vld [vmem:[#allocation4 + $0x30] sm:$0xff]
          %v1021 = vld [vmem:[#allocation4 + $0x38] sm:$0xff]
          %1023 = vset.pattern.permute.xlu0 0
          %1024 = vperm.xlu0 %1023, %v1006
          %v1025 = vpop.permute.xlu0 %1024
          %1028 = vset.pattern.permute.xlu0 0
          %1029 = vperm.xlu0 %1028, %v1007
          %v1030 = vpop.permute.xlu0 %1029
          %1033 = vset.pattern.permute.xlu0 0
          %1034 = vperm.xlu0 %1033, %v1008
          %v1035 = vpop.permute.xlu0 %1034
          %1038 = vset.pattern.permute.xlu0 0
          %1039 = vperm.xlu0 %1038, %v1009
          %v1040 = vpop.permute.xlu0 %1039
          %1043 = vset.pattern.permute.xlu0 0
          %1044 = vperm.xlu0 %1043, %v1010
          %v1045 = vpop.permute.xlu0 %1044
          %1048 = vset.pattern.permute.xlu0 0
          %1049 = vperm.xlu0 %1048, %v1011
          %v1050 = vpop.permute.xlu0 %1049
          %1053 = vset.pattern.permute.xlu0 0
          %1054 = vperm.xlu0 %1053, %v1012
          %v1055 = vpop.permute.xlu0 %1054
          %1058 = vset.pattern.permute.xlu0 0
          %1059 = vperm.xlu0 %1058, %v1013
          %v1060 = vpop.permute.xlu0 %1059
          %v1062 = vmul.f32 %v1014, %v1025
          %v1063 = vmul.f32 %v1015, %v1030
          %v1064 = vmul.f32 %v1016, %v1035
          %v1065 = vmul.f32 %v1017, %v1040
          %v1066 = vmul.f32 %v1018, %v1045
          %v1067 = vmul.f32 %v1019, %v1050
          %v1068 = vmul.f32 %v1020, %v1055
          %v1069 = vmul.f32 %v1021, %v1060
          %1070 = vst.msk [vmem:[%s327] sm:$0xff] %vm443, %v1062
          %1071 = vst.msk [vmem:[%s327 + $0x8] sm:$0xff] %vm443, %v1063
          %1072 = vst.msk [vmem:[%s327 + $0x10] sm:$0xff] %vm443, %v1064
          %1073 = vst.msk [vmem:[%s327 + $0x18] sm:$0xff] %vm443, %v1065
          %1074 = vst.msk [vmem:[%s327 + $0x20] sm:$0xff] %vm443, %v1066
          %1075 = vst.msk [vmem:[%s327 + $0x28] sm:$0xff] %vm443, %v1067
          %1076 = vst.msk [vmem:[%s327 + $0x30] sm:$0xff] %vm443, %v1068
          %1077 = vst.msk [vmem:[%s327 + $0x38] sm:$0xff] %vm443, %v1069
        $region44: #{tpu_custom_call.1} parent=35 // pred_fallthru
          _
        %s1078 = sand.u32 %s163, 1
        %s1079 = scalar_lea.sflag [#allocation6], %s1078
        %s1080 = sand.u32 %s163, 1
        %s1081 = smul.addr %s1080, 64
        %s1082 = scalar_lea.vmem [#allocation5], %s1081
        // Predicated region
        $region45: #{tpu_custom_call.1} parent=35 // pred_check
          %p1083 = pneg %p173
        $region46: #{tpu_custom_call.1} parent=35 // pred_check_branch
          %1085 = sbr.rel (%p1083) target = $region48
        $region47: #{tpu_custom_call.1} parent=35 // pred_region
          %s1086 = smul.u32 4, %s24
          %1088 = vsyncadd %s1079, 0
          %s1089 = smul.addr %s1086, 2
          %s1090 = smul.addr %s23, 8
          %s1091 = sadd.s32 %s1089, %s1090
          %s1092 = smul.addr %s1091, 8
          %s1093 = scalar_lea.hbm %s4, %s1092
          %s1094 = sshll.u32 %s1082, 4
          %s1095 = int_to_ptr.vmem [resolvable:$true] %s1094
          %s1096 = sshll.u32 %s1093, 4
          %s1097 = int_to_ptr.hbm [resolvable:$true] %s1096
          %1102 = dma.vmem_to_hbm [thread:$0]  %s1095, 1024, %s1097, %s1079, 128, 128, 8
        $region48: #{tpu_custom_call.1} parent=35 // pred_fallthru
          _
      $region36: #{tpu_custom_call.1} parent=5 // pred_fallthru
        _
      %p1103 = scmp.le.s32.totalorder 2, %s13
      // Predicated region
      $region49: #{tpu_custom_call.1} parent=5 // pred_check
        %p1104 = pneg %p1103
      $region50: #{tpu_custom_call.1} parent=5 // pred_check_branch
        %1106 = sbr.rel (%p1104) target = $region52
      $region51: #{tpu_custom_call.1} parent=5 // pred_region
        %s1107 = ssub.s32 %s13, 2
        // Predicated region
        $region53: #{tpu_custom_call.1} parent=51 // pred_check
          %p1108 = pneg %p179
        $region54: #{tpu_custom_call.1} parent=51 // pred_check_branch
          %1110 = sbr.rel (%p1108) target = $region56
        $region55: #{tpu_custom_call.1} parent=51 // pred_region
          %s1111 = sand.u32 %s164, 1
          %s1112 = scalar_lea.sflag [#allocation6], %s1111
          %s1113 = sand.u32 %s164, 1
          %s1114 = smul.addr %s1113, 64
          %s1115 = scalar_lea.vmem [#allocation5], %s1114
          %1117 = dma.done %s1112, 1024
        $region56: #{tpu_custom_call.1} parent=51 // pred_fallthru
          _
      $region52: #{tpu_custom_call.1} parent=5 // pred_fallthru
        _
    $region6: #{tpu_custom_call.1} parent=1 // loop_footer
      %s17 = sadd.s32 1, %s13
    $region7: #{tpu_custom_call.1} parent=1 // loop_footer_branch
      %12 = sbr.rel target = $region3
    $region8: #{tpu_custom_call.1} parent=1 // loop_exit
      _
    %1118 = vsyncpa [#allocation6], 1
    %s1119 = scalar_lea.sflag [#allocation6], 1
    %1120 = vsyncpa %s1119, 1

</llo_original>
